<compile_context>
chip_gen: v7x
topology: tpu7x:2x2x1
jax: 0.10.0
libtpu: 0.0.40
codegen_flags: <defaults>
</compile_context>

<pallas_src>
import functools

import jax
import jax.numpy as jnp
from jax.experimental import pallas as pl
from jax.experimental.pallas import tpu as pltpu


def _se_kernel(x_ref, w1_ref, w2_ref, out_ref, *pooled_refs):
    # x_ref:  (TB, C, HW)   w1_ref: (C, Cr) f32   w2_ref: (Cr, C) f32
    # out_ref: (TB, C, HW)  pooled_refs (optional): [(TB, 1, C) f32]
    hw = x_ref.shape[-1]
    inv_hw = jnp.float32(1.0 / hw)

    # --- Squeeze: spatial mean over the lane (HW) axis, f32 accumulation. ---
    y = jnp.sum(x_ref[...], axis=-1, dtype=jnp.float32) * inv_hw        # (TB, C)

    # --- Excitation: Linear -> ReLU -> Linear -> Sigmoid (bias-free, tiny). ---
    h = jnp.dot(y, w1_ref[...], preferred_element_type=jnp.float32)     # (TB, Cr)
    h = jnp.maximum(h, 0.0)
    z = jnp.dot(h, w2_ref[...], preferred_element_type=jnp.float32)     # (TB, C)
    s = 1.0 / (1.0 + jnp.exp(-z))                                       # (TB, C) f32

    # --- Scale: re-stream x from VMEM; per-channel lane broadcast of s. ---
    out_ref[...] = x_ref[...] * s.astype(out_ref.dtype)[:, :, None]

    # --- pooled_neg = mean(x * (1 - s), spatial) == y * (1 - s), kept f32. ---
    if pooled_refs:  # static (trace-time) check; only built when ft_flag=False
        pooled_refs[0][...] = (y * (1.0 - s))[:, None, :]


def _x_block_spec(block_shape, index_map, deep_pipeline):
    if deep_pipeline:
        try:
            return pl.BlockSpec(block_shape, index_map,
                                pipeline_mode=pl.Buffered(3))
        except Exception:  # older jax without pipeline_mode kwarg
            pass
    return pl.BlockSpec(block_shape, index_map)


@functools.partial(jax.jit, static_argnames=("ft_flag", "donate_input"))
def se_layer(x, w1_t, w2_t, ft_flag=False, donate_input=False):
    """x: (B, C, H, W); w1_t: (C, C//r); w2_t: (C//r, C)."""
    B, C, H, W = x.shape
    Cr = w1_t.shape[1]
    HW = H * W

    # NCHW kept: this reshape is metadata-only (no HBM traffic).
    x_flat = x.reshape(B, C, HW)
    # Weight cast hoisted out of the kernel (tiny matrices, done once).
    w1_f = w1_t.astype(jnp.float32)
    w2_f = w2_t.astype(jnp.float32)

    elt = jnp.dtype(x.dtype).itemsize
    per_image_bytes = C * HW * elt

    # --- Pick TB (images per grid step): ~1 MiB blocks, but keep >= ~8 steps
    # on the grid so the pipeliner / megacore still have work. ---
    target_block_bytes = 1 << 20
    tb = min(B,
             max(1, target_block_bytes // max(per_image_bytes, 1)),
             max(1, B // 8))
    while B % tb:
        tb -= 1
    grid = (B // tb,)
    block_bytes = tb * per_image_bytes

    # --- VMEM budget: derive cap from hardware, ~25% headroom. ---
    try:
        vmem_cap = int(pltpu.get_tpu_info().vmem_capacity_bytes)
    except Exception:
        vmem_cap = 64 << 20  # conservative (v7x-sized) fallback
    vmem_cap = (vmem_cap * 3) // 4  # ~48 MiB on v7x, ~96 MiB on v5e/v6e
    vmem_bytes = int(min(max(6 * block_bytes + (2 << 20), 16 << 20), vmem_cap))

    # Deeper input buffering only pays for tiny blocks on longer grids.
    deep_pipeline = (block_bytes <= (512 << 10)) and (grid[0] >= 4)

    out_shapes = [jax.ShapeDtypeStruct((B, C, HW), x.dtype)]
    out_specs = [pl.BlockSpec((tb, C, HW), lambda b: (b, 0, 0))]
    if not ft_flag:
        out_shapes.append(jax.ShapeDtypeStruct((B, 1, C), jnp.float32))
        out_specs.append(pl.BlockSpec((tb, 1, C), lambda b: (b, 0, 0)))

    cost = pl.CostEstimate(
        # reduce adds + scale muls + pooled/sigmoid eltwise + 2 tiny matmuls
        flops=int(2 * B * HW * C + 6 * B * C + 4 * B * C * Cr),
        transcendentals=int(B * C),
        bytes_accessed=int(2 * B * HW * C * elt + B * C * 4 + 2 * C * Cr * 4),
    )

    results = pl.pallas_call(
        _se_kernel,
        out_shape=tuple(out_shapes),
        grid=grid,
        in_specs=[
            _x_block_spec((tb, C, HW), lambda b: (b, 0, 0), deep_pipeline),
            pl.BlockSpec((C, Cr), lambda b: (0, 0)),
            pl.BlockSpec((Cr, C), lambda b: (0, 0)),
        ],
        out_specs=tuple(out_specs),
        # Only alias when the caller actually donates x; otherwise XLA would
        # insert a defensive copy and cost a full extra pass over x.
        input_output_aliases=({0: 0} if donate_input else {}),
        compiler_params=pltpu.CompilerParams(
            dimension_semantics=("parallel",),
            vmem_limit_bytes=vmem_bytes,
        ),
        cost_estimate=cost,
    )(x_flat, w1_f, w2_f)

    out = results[0].reshape(B, C, H, W)  # metadata-only
    if ft_flag:
        return out
    pooled_neg = results[1].reshape(B, C)
    return out, pooled_neg


def _reference(x, w1_t, w2_t):
    xf = x.astype(jnp.float32)
    y = jnp.mean(xf, axis=(2, 3))
    h = jnp.maximum(y @ w1_t, 0.0)
    s = jax.nn.sigmoid(h @ w2_t)
    s4 = s[:, :, None, None]
    return xf * s4, jnp.mean(xf * (1.0 - s4), axis=(2, 3))


if __name__ == "__main__":
    # channels = 128 (lane-dense), reduction = 16 -> hidden = 8
    B, C, H, W = 2, 128, 8, 8
    reduction = 16
    Cr = C // reduction

    key = jax.random.PRNGKey(0)
    kx, k1, k2 = jax.random.split(key, 3)
    x = jax.random.normal(kx, (B, C, H, W), dtype=jnp.float32)

    # PyTorch Linear weights are (out, in); we pass the transposed (in, out)
    # matrices used for y @ W.
    w1 = jax.random.normal(k1, (Cr, C), dtype=jnp.float32) * (1.0 / jnp.sqrt(C))
    w2 = jax.random.normal(k2, (C, Cr), dtype=jnp.float32) * (1.0 / jnp.sqrt(Cr))
    w1_t = w1.T  # (C, Cr)
    w2_t = w2.T  # (Cr, C)

    out, pooled_neg = se_layer(x, w1_t, w2_t, ft_flag=False)
    jax.block_until_ready((out, pooled_neg))

    ref_out, ref_pooled = _reference(x, w1_t, w2_t)
    assert jnp.allclose(out, ref_out, atol=1e-5, rtol=1e-5)
    assert jnp.allclose(pooled_neg, ref_pooled, atol=1e-5, rtol=1e-5)

    # ft_flag=True branch (no pooled_neg output, slimmer kernel)
    out_ft = se_layer(x, w1_t, w2_t, ft_flag=True)
    jax.block_until_ready(out_ft)
    assert jnp.allclose(out_ft, ref_out, atol=1e-5, rtol=1e-5)

    print("KERNEL_OK")
</pallas_src>

<mosaic_0001>
module attributes {stable_mosaic.version = 11 : i64} {
  func.func @_se_kernel(%arg0: i32, %arg1: memref<1x128x64xf32, #tpu.memory_space<vmem>>, %arg2: memref<128x8xf32, #tpu.memory_space<vmem>>, %arg3: memref<8x128xf32, #tpu.memory_space<vmem>>, %arg4: memref<1x128x64xf32, #tpu.memory_space<vmem>>, %arg5: memref<1x1x128xf32, #tpu.memory_space<vmem>>) attributes {dimension_semantics = [#tpu.dimension_semantics<parallel>], iteration_bounds = array<i64: 2>, scalar_prefetch = 0 : i64, scratch_operands = 0 : i64, tpu.core_type = #tpu.core_type<tc>, window_params = [{transform_indices = @transform_0, window_bounds = array<i64: 1, 128, 64>}, {pipeline_mode = #tpu.pipeline_mode<synchronous>, transform_indices = @transform_1, window_bounds = array<i64: 128, 8>}, {pipeline_mode = #tpu.pipeline_mode<synchronous>, transform_indices = @transform_2, window_bounds = array<i64: 8, 128>}, {transform_indices = @transform_3, window_bounds = array<i64: 1, 128, 64>}, {transform_indices = @transform_4, window_bounds = array<i64: 1, 1, 128>}]} {
    %c0 = arith.constant 0 : index
    %c0_0 = arith.constant 0 : index
    %c0_1 = arith.constant 0 : index
    %0 = vector.load %arg1[%c0, %c0_0, %c0_1] : memref<1x128x64xf32, #tpu.memory_space<vmem>>, vector<1x128x64xf32>
    %cst = arith.constant dense<0.000000e+00> : vector<1x128xf32>
    %1 = vector.multi_reduction <add>, %0, %cst [2] : vector<1x128x64xf32> to vector<1x128xf32>
    %cst_2 = arith.constant 1.562500e-02 : f32
    %2 = vector.broadcast %cst_2 : f32 to vector<1x128xf32>
    %3 = arith.mulf %1, %2 : vector<1x128xf32>
    %c0_3 = arith.constant 0 : index
    %c0_4 = arith.constant 0 : index
    %4 = vector.load %arg2[%c0_3, %c0_4] : memref<128x8xf32, #tpu.memory_space<vmem>>, vector<128x8xf32>
    %cst_5 = arith.constant dense<0.000000e+00> : vector<1x8xf32>
    %5 = tpu.matmul %3, %4, %cst_5 {dimension_numbers = #tpu.dot_dimension_numbers<[1], [0], [0], [1], [0, 0, 1, 1], [], []>} : vector<1x128xf32>, vector<128x8xf32>, vector<1x8xf32> -> vector<1x8xf32>
    %cst_6 = arith.constant 0.000000e+00 : f32
    %6 = vector.broadcast %cst_6 : f32 to vector<1x8xf32>
    %7 = arith.maximumf %5, %6 : vector<1x8xf32>
    %c0_7 = arith.constant 0 : index
    %c0_8 = arith.constant 0 : index
    %8 = vector.load %arg3[%c0_7, %c0_8] : memref<8x128xf32, #tpu.memory_space<vmem>>, vector<8x128xf32>
    %cst_9 = arith.constant dense<0.000000e+00> : vector<1x128xf32>
    %9 = tpu.matmul %7, %8, %cst_9 {dimension_numbers = #tpu.dot_dimension_numbers<[1], [0], [0], [1], [0, 0, 1, 1], [], []>} : vector<1x8xf32>, vector<8x128xf32>, vector<1x128xf32> -> vector<1x128xf32>
    %cst_10 = arith.constant 0.000000e+00 : f32
    %10 = vector.broadcast %cst_10 : f32 to vector<1x128xf32>
    %11 = arith.subf %10, %9 : vector<1x128xf32>
    %12 = math.exp %11 : vector<1x128xf32>
    %cst_11 = arith.constant 1.000000e+00 : f32
    %13 = vector.broadcast %cst_11 : f32 to vector<1x128xf32>
    %14 = arith.addf %13, %12 : vector<1x128xf32>
    %cst_12 = arith.constant 1.000000e+00 : f32
    %15 = vector.broadcast %cst_12 : f32 to vector<1x128xf32>
    %16 = arith.divf %15, %14 : vector<1x128xf32>
    %c0_13 = arith.constant 0 : index
    %c0_14 = arith.constant 0 : index
    %c0_15 = arith.constant 0 : index
    %17 = vector.load %arg1[%c0_13, %c0_14, %c0_15] : memref<1x128x64xf32, #tpu.memory_space<vmem>>, vector<1x128x64xf32>
    %18 = vector.shape_cast %16 : vector<1x128xf32> to vector<1x128x1xf32>
    %19 = vector.broadcast %18 : vector<1x128x1xf32> to vector<1x128x64xf32>
    %20 = arith.mulf %17, %19 : vector<1x128x64xf32>
    %c0_16 = arith.constant 0 : index
    %c0_17 = arith.constant 0 : index
    %c0_18 = arith.constant 0 : index
    %21 = vector.load %arg4[%c0_16, %c0_17, %c0_18] : memref<1x128x64xf32, #tpu.memory_space<vmem>>, vector<1x128x64xf32>
    tpu.vector_store %arg4[%c0_16, %c0_17, %c0_18], %20 {strides = array<i32>} : memref<1x128x64xf32, #tpu.memory_space<vmem>>, vector<1x128x64xf32>,
    %cst_19 = arith.constant 1.000000e+00 : f32
    %22 = vector.broadcast %cst_19 : f32 to vector<1x128xf32>
    %23 = arith.subf %22, %16 : vector<1x128xf32>
    %24 = arith.mulf %3, %23 : vector<1x128xf32>
    %25 = vector.shape_cast %24 : vector<1x128xf32> to vector<1x1x128xf32>
    %c0_20 = arith.constant 0 : index
    %c0_21 = arith.constant 0 : index
    %c0_22 = arith.constant 0 : index
    %26 = vector.load %arg5[%c0_20, %c0_21, %c0_22] : memref<1x1x128xf32, #tpu.memory_space<vmem>>, vector<1x1x128xf32>
    tpu.vector_store %arg5[%c0_20, %c0_21, %c0_22], %25 {strides = array<i32>} : memref<1x1x128xf32, #tpu.memory_space<vmem>>, vector<1x1x128xf32>,
    return
  }
  func.func @transform_0(%arg0: i32) -> (i32, i32, i32) {
    %c0_i32 = arith.constant 0 : i32
    %c0_i32_0 = arith.constant 0 : i32
    %c0_i32_1 = arith.constant 0 : i32
    return %arg0, %c0_i32, %c0_i32_0 : i32, i32, i32
  }
  func.func @transform_1(%arg0: i32) -> (i32, i32) {
    %c0_i32 = arith.constant 0 : i32
    %c0_i32_0 = arith.constant 0 : i32
    %c0_i32_1 = arith.constant 0 : i32
    return %c0_i32, %c0_i32_0 : i32, i32
  }
  func.func @transform_2(%arg0: i32) -> (i32, i32) {
    %c0_i32 = arith.constant 0 : i32
    %c0_i32_0 = arith.constant 0 : i32
    %c0_i32_1 = arith.constant 0 : i32
    return %c0_i32, %c0_i32_0 : i32, i32
  }
  func.func @transform_3(%arg0: i32) -> (i32, i32, i32) {
    %c0_i32 = arith.constant 0 : i32
    %c0_i32_0 = arith.constant 0 : i32
    %c0_i32_1 = arith.constant 0 : i32
    return %arg0, %c0_i32, %c0_i32_0 : i32, i32, i32
  }
  func.func @transform_4(%arg0: i32) -> (i32, i32, i32) {
    %c0_i32 = arith.constant 0 : i32
    %c0_i32_0 = arith.constant 0 : i32
    %c0_i32_1 = arith.constant 0 : i32
    return %arg0, %c0_i32, %c0_i32_0 : i32, i32, i32
  }
}

</mosaic_0001>

<llo_original>
// kernel: se_layer.1
$region0: #{se_layer.1}
  #allocation0 [shape = 'u32[]', space=smem, size = 0x4, offset = 0x4, fixed_abs, tag = 'smem constant byte address 0x4 - core index']
  #allocation1 [shape = 'u32[144,128]{1,0:T(1,128)}', space=vmem, size = 0x12000, scoped, tag = 'internal scratch']
  %s0 = inlined_call_operand.vmem [shape: f32[2,128,64], index: 0, kind: input, shape index: {}]
  %s1 = inlined_call_operand.vmem [shape: f32[128,8], index: 1, kind: input, shape index: {}]
  %s2 = inlined_call_operand.vmem [shape: f32[8,128], index: 2, kind: input, shape index: {}]
  %s3 = inlined_call_operand.vmem [shape: f32[2,128,64], index: 3, kind: output, shape index: {0}]
  %s4 = inlined_call_operand.hbm [shape: f32[2,1,128], index: 4, kind: output, shape index: {1}]
  %5 = xla_tuple %s3, %s4
  %s6 = sld [smem:[#allocation0]]
  $region53: #{se_layer.1} parent=0
    _
  %s8 = ssub.s32 1, %s6
  %s9 = scalar_select 0, %s8, %s6
  $region1: #{se_layer.1} parent=0
    #allocation2 [shape = 'u8[1024]{0}', space=vmem, size = 0x400, scoped, tag = 'output window, operand 1']
    #allocation3 [shape = 's32[2]{0}', space=sflag, size = 0x8, scoped, tag = 'scoped memory for se_layer.1']
    %10 = vsyncpa [#allocation3], 0
    %s11 = scalar_lea.sflag [#allocation3], 1
    %12 = vsyncpa %s11, 0
    loop: start=0, step=1, limit=4
    $region2: #{se_layer.1} parent=1 // loop_pre_header
      _
    $region3: #{se_layer.1} parent=1 // loop_header
      %s14 = sphi 0, %s18
      %p15 = scmp.ge.s32.totalorder %s14, 4
      %s24 = sphi 0, %s26
      %s27 = sphi 0, %s24
      %s28 = sphi 0, %s27
      %s44 = sphi 0, %s28
      %s48 = sphi 0, %s48
      %s50 = sphi 0, %s48
      %s51 = sphi 0, %s50
      %s65 = sphi 0, %s51
      %s69 = sphi 0, %s69
      %s71 = sphi 0, %s69
      %s72 = sphi 0, %s71
      %s86 = sphi 0, %s72
      %s92 = sphi 0, %s94
      %s95 = sphi 0, %s92
      %s96 = sphi 0, %s95
      %s112 = sphi 0, %s96
      %s118 = sphi 0, %s120
      %s121 = sphi 0, %s118
      %s122 = sphi 0, %s121
      %s138 = sphi 0, %s122
    $region4: #{se_layer.1} parent=1 // loop_header_branch
      %17 = sbr.rel (%p15) target = $region8
    $region5: #{se_layer.1} parent=1 // loop_body
      %s19 = ssub.s32 %s14, 1
      %s20 = ssub.s32 %s14, 2
      %s21 = sadd.s32 %s14, 1
      %s22 = ssub.s32 %s14, %s21
      %p23 = scmp.eq.s32.totalorder %s22, 0
      %s25 = sadd.s32 %s24, 1
      %s26 = scalar_select %p23, %s24, %s25
      %p29 = pneg %p23
      %p30 = scmp.eq.s32.totalorder %s14, 1
      %p31 = por %p29, %p30
      %p32 = scmp.ne.s32.totalorder %s24, %s27
      %p33 = scmp.eq.s32.totalorder %s14, 0
      %p34 = por %p32, %p33
      %p35 = scmp.ne.s32.totalorder %s24, %s27
      %p36 = scmp.eq.s32.totalorder %s19, 1
      %p37 = por %p35, %p36
      %p38 = scmp.ne.s32.totalorder %s27, %s28
      %p39 = scmp.eq.s32.totalorder %s19, 0
      %p40 = por %p38, %p39
      %p41 = scmp.ne.s32.totalorder %s27, %s28
      %p42 = scmp.eq.s32.totalorder %s20, 1
      %p43 = por %p41, %p42
      %p45 = scmp.ne.s32.totalorder %s28, %s44
      %p46 = scmp.eq.s32.totalorder %s20, 0
      %p47 = por %p45, %p46
      %s49 = sadd.s32 %s48, 1
      %p52 = scmp.eq.s32.totalorder %s14, 1
      %p53 = scmp.ne.s32.totalorder %s48, %s50
      %p54 = scmp.eq.s32.totalorder %s14, 0
      %p55 = por %p53, %p54
      %p56 = scmp.ne.s32.totalorder %s48, %s50
      %p57 = scmp.eq.s32.totalorder %s19, 1
      %p58 = por %p56, %p57
      %p59 = scmp.ne.s32.totalorder %s50, %s51
      %p60 = scmp.eq.s32.totalorder %s19, 0
      %p61 = por %p59, %p60
      %p62 = scmp.ne.s32.totalorder %s50, %s51
      %p63 = scmp.eq.s32.totalorder %s20, 1
      %p64 = por %p62, %p63
      %p66 = scmp.ne.s32.totalorder %s51, %s65
      %p67 = scmp.eq.s32.totalorder %s20, 0
      %p68 = por %p66, %p67
      %s70 = sadd.s32 %s69, 1
      %p73 = scmp.eq.s32.totalorder %s14, 1
      %p74 = scmp.ne.s32.totalorder %s69, %s71
      %p75 = scmp.eq.s32.totalorder %s14, 0
      %p76 = por %p74, %p75
      %p77 = scmp.ne.s32.totalorder %s69, %s71
      %p78 = scmp.eq.s32.totalorder %s19, 1
      %p79 = por %p77, %p78
      %p80 = scmp.ne.s32.totalorder %s71, %s72
      %p81 = scmp.eq.s32.totalorder %s19, 0
      %p82 = por %p80, %p81
      %p83 = scmp.ne.s32.totalorder %s71, %s72
      %p84 = scmp.eq.s32.totalorder %s20, 1
      %p85 = por %p83, %p84
      %p87 = scmp.ne.s32.totalorder %s72, %s86
      %p88 = scmp.eq.s32.totalorder %s20, 0
      %p89 = por %p87, %p88
      %s90 = ssub.s32 %s14, %s21
      %p91 = scmp.eq.s32.totalorder %s90, 0
      %s93 = sadd.s32 %s92, 1
      %s94 = scalar_select %p91, %s92, %s93
      %p97 = pneg %p91
      %p98 = scmp.eq.s32.totalorder %s14, 1
      %p99 = por %p97, %p98
      %p100 = scmp.ne.s32.totalorder %s92, %s95
      %p101 = scmp.eq.s32.totalorder %s14, 0
      %p102 = por %p100, %p101
      %p103 = scmp.ne.s32.totalorder %s92, %s95
      %p104 = scmp.eq.s32.totalorder %s19, 1
      %p105 = por %p103, %p104
      %p106 = scmp.ne.s32.totalorder %s95, %s96
      %p107 = scmp.eq.s32.totalorder %s19, 0
      %p108 = por %p106, %p107
      %p109 = scmp.ne.s32.totalorder %s95, %s96
      %p110 = scmp.eq.s32.totalorder %s20, 1
      %p111 = por %p109, %p110
      %p113 = scmp.ne.s32.totalorder %s96, %s112
      %p114 = scmp.eq.s32.totalorder %s20, 0
      %p115 = por %p113, %p114
      %s116 = ssub.s32 %s14, %s21
      %p117 = scmp.eq.s32.totalorder %s116, 0
      %s119 = sadd.s32 %s118, 1
      %s120 = scalar_select %p117, %s118, %s119
      %p123 = pneg %p117
      %p124 = scmp.eq.s32.totalorder %s14, 1
      %p125 = por %p123, %p124
      %p126 = scmp.ne.s32.totalorder %s118, %s121
      %p127 = scmp.eq.s32.totalorder %s14, 0
      %p128 = por %p126, %p127
      %p129 = scmp.ne.s32.totalorder %s118, %s121
      %p130 = scmp.eq.s32.totalorder %s19, 1
      %p131 = por %p129, %p130
      %p132 = scmp.ne.s32.totalorder %s121, %s122
      %p133 = scmp.eq.s32.totalorder %s19, 0
      %p134 = por %p132, %p133
      %p135 = scmp.ne.s32.totalorder %s121, %s122
      %p136 = scmp.eq.s32.totalorder %s20, 1
      %p137 = por %p135, %p136
      %p139 = scmp.ne.s32.totalorder %s122, %s138
      %p140 = scmp.eq.s32.totalorder %s20, 0
      %p141 = por %p139, %p140
      %p142 = scmp.le.s32.totalorder 1, %s14
      %p143 = scmp.lt.s32.totalorder %s14, 3
      %p144 = pnand %p142, %p143
      %p145 = pneg %p144
      // Predicated region
      $region9: #{se_layer.1} parent=5 // pred_check
        _
      $region10: #{se_layer.1} parent=5 // pred_check_branch
        %147 = sbr.rel (%p144) target = $region12
      $region11: #{se_layer.1} parent=5 // pred_region
        %s148 = ssub.s32 %s14, 1
        // Predicated region
        $region13: #{se_layer.1} parent=11 // pred_check
          %p149 = pneg %p61
        $region14: #{se_layer.1} parent=11 // pred_check_branch
          %151 = sbr.rel (%p149) target = $region16
        $region15: #{se_layer.1} parent=11 // pred_region
          _
        $region16: #{se_layer.1} parent=11 // pred_fallthru
          _
        // Predicated region
        $region17: #{se_layer.1} parent=11 // pred_check
          %p152 = pneg %p82
        $region18: #{se_layer.1} parent=11 // pred_check_branch
          %154 = sbr.rel (%p152) target = $region20
        $region19: #{se_layer.1} parent=11 // pred_region
          _
        $region20: #{se_layer.1} parent=11 // pred_fallthru
          _
      $region12: #{se_layer.1} parent=5 // pred_fallthru
        _
      %p155 = scmp.lt.s32.totalorder %s14, 2
      // Predicated region
      $region21: #{se_layer.1} parent=5 // pred_check
        %p156 = pneg %p155
      $region22: #{se_layer.1} parent=5 // pred_check_branch
        %158 = sbr.rel (%p156) target = $region24
      $region23: #{se_layer.1} parent=5 // pred_region
        // Predicated region
        $region25: #{se_layer.1} parent=23 // pred_check
          %p159 = pneg %p34
        $region26: #{se_layer.1} parent=23 // pred_check_branch
          %161 = sbr.rel (%p159) target = $region28
        $region27: #{se_layer.1} parent=23 // pred_region
          %p162 = scmp.lt.s32.totalorder %s14, 1
          %s163 = scalar_select %p162, %s14, 1
          %s164 = smul.addr %s163, 16
          %s165 = smul.addr %s164, 8
          %s166 = scalar_lea.vmem %s0, %s165
        $region28: #{se_layer.1} parent=23 // pred_fallthru
          _
      $region24: #{se_layer.1} parent=5 // pred_fallthru
        _
      %p167 = scmp.le.s32.totalorder 1, %s14
      %p168 = scmp.lt.s32.totalorder %s14, 3
      %p169 = pnand %p167, %p168
      %p170 = pneg %p169
      // Predicated region
      $region29: #{se_layer.1} parent=5 // pred_check
        _
      $region30: #{se_layer.1} parent=5 // pred_check_branch
        %172 = sbr.rel (%p169) target = $region32
      $region31: #{se_layer.1} parent=5 // pred_region
        %s173 = ssub.s32 %s14, 1
        %p174 = scmp.lt.s32.totalorder %s19, 1
        %s175 = scalar_select %p174, %s19, 1
        %s176 = smul.addr %s175, 16
        %s177 = smul.addr %s176, 8
        %s178 = scalar_lea.vmem %s0, %s177
        %p179 = pneg %p40
        %p180 = pneg %p37
        %p181 = pneg %p61
        %p182 = pneg %p58
        %p183 = pneg %p82
        %p184 = pneg %p79
        %p185 = pneg %p108
        %p186 = pneg %p105
        %p187 = scmp.lt.s32.totalorder %s19, 1
        %s188 = scalar_select %p187, %s19, 1
        %s189 = smul.addr %s188, 16
        %s190 = smul.addr %s189, 8
        %s191 = scalar_lea.vmem %s3, %s190
        %p192 = pneg %p134
        %p193 = pneg %p131
        %s194 = sand.u32 %s121, 1
        %s195 = scalar_lea.sflag [#allocation3], %s194
        %s196 = sand.u32 %s121, 1
        %s197 = scalar_lea.vmem [#allocation2], %s196
        %p198 = scmp.lt.s32.totalorder %s19, 1
        %s199 = scalar_select %p198, %s19, 1
        %s200 = smul.addr %s199, 16
        %s201 = smul.addr %s200, 8
        %s202 = scalar_lea.vmem %s0, %s201
        %p203 = scmp.lt.s32.totalorder %s19, 1
        %s204 = scalar_select %p203, %s19, 1
        %s205 = smul.addr %s204, 16
        %s206 = smul.addr %s205, 8
        %s207 = scalar_lea.vmem %s3, %s206
        %v208 = vld [vmem:[%s202] sm:$0xff]
        %v209 = vld [vmem:[%s202 + $0x8] sm:$0xff]
        %v210 = vld [vmem:[%s202 + $0x10] sm:$0xff]
        %v211 = vld [vmem:[%s202 + $0x18] sm:$0xff]
        %v212 = vld [vmem:[%s202 + $0x20] sm:$0xff]
        %v213 = vld [vmem:[%s202 + $0x28] sm:$0xff]
        %v214 = vld [vmem:[%s202 + $0x30] sm:$0xff]
        %v215 = vld [vmem:[%s202 + $0x38] sm:$0xff]
        %v216 = vld [vmem:[%s202 + $0x40] sm:$0xff]
        %v217 = vld [vmem:[%s202 + $0x48] sm:$0xff]
        %v218 = vld [vmem:[%s202 + $0x50] sm:$0xff]
        %v219 = vld [vmem:[%s202 + $0x58] sm:$0xff]
        %v220 = vld [vmem:[%s202 + $0x60] sm:$0xff]
        %v221 = vld [vmem:[%s202 + $0x68] sm:$0xff]
        %v222 = vld [vmem:[%s202 + $0x70] sm:$0xff]
        %v223 = vld [vmem:[%s202 + $0x78] sm:$0xff]
        %vm224 = vcmask 523264
        %v225 = vsel %vm224, %v208, 0.0
        %226 = vadd.xlane.f32.xlu0 %v225
        %v227 = vpop.xlane.xlu0 %226
        %v228 = vsel %vm224, %v209, 0.0
        %229 = vadd.xlane.f32.xlu0 %v228
        %v230 = vpop.xlane.xlu0 %229
        %v231 = vsel %vm224, %v210, 0.0
        %232 = vadd.xlane.f32.xlu0 %v231
        %v233 = vpop.xlane.xlu0 %232
        %v234 = vsel %vm224, %v211, 0.0
        %235 = vadd.xlane.f32.xlu0 %v234
        %v236 = vpop.xlane.xlu0 %235
        %v237 = vsel %vm224, %v212, 0.0
        %238 = vadd.xlane.f32.xlu0 %v237
        %v239 = vpop.xlane.xlu0 %238
        %v240 = vsel %vm224, %v213, 0.0
        %241 = vadd.xlane.f32.xlu0 %v240
        %v242 = vpop.xlane.xlu0 %241
        %v243 = vsel %vm224, %v214, 0.0
        %244 = vadd.xlane.f32.xlu0 %v243
        %v245 = vpop.xlane.xlu0 %244
        %v246 = vsel %vm224, %v215, 0.0
        %247 = vadd.xlane.f32.xlu0 %v246
        %v248 = vpop.xlane.xlu0 %247
        %v249 = vsel %vm224, %v216, 0.0
        %250 = vadd.xlane.f32.xlu0 %v249
        %v251 = vpop.xlane.xlu0 %250
        %v252 = vsel %vm224, %v217, 0.0
        %253 = vadd.xlane.f32.xlu0 %v252
        %v254 = vpop.xlane.xlu0 %253
        %v255 = vsel %vm224, %v218, 0.0
        %256 = vadd.xlane.f32.xlu0 %v255
        %v257 = vpop.xlane.xlu0 %256
        %v258 = vsel %vm224, %v219, 0.0
        %259 = vadd.xlane.f32.xlu0 %v258
        %v260 = vpop.xlane.xlu0 %259
        %v261 = vsel %vm224, %v220, 0.0
        %262 = vadd.xlane.f32.xlu0 %v261
        %v263 = vpop.xlane.xlu0 %262
        %v264 = vsel %vm224, %v221, 0.0
        %265 = vadd.xlane.f32.xlu0 %v264
        %v266 = vpop.xlane.xlu0 %265
        %v267 = vsel %vm224, %v222, 0.0
        %268 = vadd.xlane.f32.xlu0 %v267
        %v269 = vpop.xlane.xlu0 %268
        %v270 = vsel %vm224, %v223, 0.0
        %271 = vadd.xlane.f32.xlu0 %v270
        %v272 = vpop.xlane.xlu0 %271
        %v273 = vmul.f32 %v227, 0.015625
        %v274 = vmul.f32 %v230, 0.015625
        %v275 = vmul.f32 %v233, 0.015625
        %v276 = vmul.f32 %v236, 0.015625
        %v277 = vmul.f32 %v239, 0.015625
        %v278 = vmul.f32 %v242, 0.015625
        %v279 = vmul.f32 %v245, 0.015625
        %v280 = vmul.f32 %v248, 0.015625
        %v281 = vmul.f32 %v251, 0.015625
        %v282 = vmul.f32 %v254, 0.015625
        %v283 = vmul.f32 %v257, 0.015625
        %v284 = vmul.f32 %v260, 0.015625
        %v285 = vmul.f32 %v263, 0.015625
        %v286 = vmul.f32 %v266, 0.015625
        %v287 = vmul.f32 %v269, 0.015625
        %v288 = vmul.f32 %v272, 0.015625
        %v289 = vld [vmem:[%s1] sm:$0xff]
        %v290 = vld [vmem:[%s1 + $0x8] sm:$0xff]
        %v291 = vld [vmem:[%s1 + $0x10] sm:$0xff]
        %v292 = vld [vmem:[%s1 + $0x18] sm:$0xff]
        %v293 = vld [vmem:[%s1 + $0x20] sm:$0xff]
        %v294 = vld [vmem:[%s1 + $0x28] sm:$0xff]
        %v295 = vld [vmem:[%s1 + $0x30] sm:$0xff]
        %v296 = vld [vmem:[%s1 + $0x38] sm:$0xff]
        %v297 = vld [vmem:[%s1 + $0x40] sm:$0xff]
        %v298 = vld [vmem:[%s1 + $0x48] sm:$0xff]
        %v299 = vld [vmem:[%s1 + $0x50] sm:$0xff]
        %v300 = vld [vmem:[%s1 + $0x58] sm:$0xff]
        %v301 = vld [vmem:[%s1 + $0x60] sm:$0xff]
        %v302 = vld [vmem:[%s1 + $0x68] sm:$0xff]
        %v303 = vld [vmem:[%s1 + $0x70] sm:$0xff]
        %v304 = vld [vmem:[%s1 + $0x78] sm:$0xff]
        %v321 = vlaneseq
        %v322 = vand.u32 %v321, 127
        %v323 = vlaneseq
        %v324 = vshrl.u32 %v323, 7
        %v325 = vsub.s32 %v322, %v324
        %v326 = vrot.slane %v273, %v325
        %v327 = vadd.s32 %v322, 4294967288
        %v328 = vlaneseq
        %v329 = vshrl.u32 %v328, 7
        %v330 = vsub.s32 %v327, %v329
        %v331 = vrot.slane %v274, %v330
        %vm332 = vcmask 130112
        %v333 = vsel %vm332, %v331, %v326
        %v334 = vadd.s32 %v322, 4294967280
        %v335 = vlaneseq
        %v336 = vshrl.u32 %v335, 7
        %v337 = vsub.s32 %v334, %v336
        %v338 = vrot.slane %v275, %v337
        %vm339 = vcmask 195712
        %v340 = vsel %vm339, %v338, %v333
        %v341 = vadd.s32 %v322, 4294967272
        %v342 = vlaneseq
        %v343 = vshrl.u32 %v342, 7
        %v344 = vsub.s32 %v341, %v343
        %v345 = vrot.slane %v276, %v344
        %vm346 = vcmask 261312
        %v347 = vsel %vm346, %v345, %v340
        %v348 = vadd.s32 %v322, 4294967264
        %v349 = vlaneseq
        %v350 = vshrl.u32 %v349, 7
        %v351 = vsub.s32 %v348, %v350
        %v352 = vrot.slane %v277, %v351
        %vm353 = vcmask 326912
        %v354 = vsel %vm353, %v352, %v347
        %v355 = vadd.s32 %v322, 4294967256
        %v356 = vlaneseq
        %v357 = vshrl.u32 %v356, 7
        %v358 = vsub.s32 %v355, %v357
        %v359 = vrot.slane %v278, %v358
        %vm360 = vcmask 392512
        %v361 = vsel %vm360, %v359, %v354
        %v362 = vadd.s32 %v322, 4294967248
        %v363 = vlaneseq
        %v364 = vshrl.u32 %v363, 7
        %v365 = vsub.s32 %v362, %v364
        %v366 = vrot.slane %v279, %v365
        %vm367 = vcmask 458112
        %v368 = vsel %vm367, %v366, %v361
        %v369 = vadd.s32 %v322, 4294967240
        %v370 = vlaneseq
        %v371 = vshrl.u32 %v370, 7
        %v372 = vsub.s32 %v369, %v371
        %v373 = vrot.slane %v280, %v372
        %vm374 = vcmask 523712
        %v375 = vsel %vm374, %v373, %v368
        %v376 = vadd.s32 %v322, 4294967232
        %v377 = vlaneseq
        %v378 = vshrl.u32 %v377, 7
        %v379 = vsub.s32 %v376, %v378
        %v380 = vrot.slane %v281, %v379
        %vm381 = vcmask 589312
        %v382 = vsel %vm381, %v380, %v375
        %v383 = vadd.s32 %v322, 4294967224
        %v384 = vlaneseq
        %v385 = vshrl.u32 %v384, 7
        %v386 = vsub.s32 %v383, %v385
        %v387 = vrot.slane %v282, %v386
        %vm388 = vcmask 654912
        %v389 = vsel %vm388, %v387, %v382
        %v390 = vadd.s32 %v322, 4294967216
        %v391 = vlaneseq
        %v392 = vshrl.u32 %v391, 7
        %v393 = vsub.s32 %v390, %v392
        %v394 = vrot.slane %v283, %v393
        %vm395 = vcmask 720512
        %v396 = vsel %vm395, %v394, %v389
        %v397 = vadd.s32 %v322, 4294967208
        %v398 = vlaneseq
        %v399 = vshrl.u32 %v398, 7
        %v400 = vsub.s32 %v397, %v399
        %v401 = vrot.slane %v284, %v400
        %vm402 = vcmask 786112
        %v403 = vsel %vm402, %v401, %v396
        %v404 = vadd.s32 %v322, 4294967200
        %v405 = vlaneseq
        %v406 = vshrl.u32 %v405, 7
        %v407 = vsub.s32 %v404, %v406
        %v408 = vrot.slane %v285, %v407
        %vm409 = vcmask 851712
        %v410 = vsel %vm409, %v408, %v403
        %v411 = vadd.s32 %v322, 4294967192
        %v412 = vlaneseq
        %v413 = vshrl.u32 %v412, 7
        %v414 = vsub.s32 %v411, %v413
        %v415 = vrot.slane %v286, %v414
        %vm416 = vcmask 917312
        %v417 = vsel %vm416, %v415, %v410
        %v418 = vadd.s32 %v322, 4294967184
        %v419 = vlaneseq
        %v420 = vshrl.u32 %v419, 7
        %v421 = vsub.s32 %v418, %v420
        %v422 = vrot.slane %v287, %v421
        %vm423 = vcmask 982912
        %v424 = vsel %vm423, %v422, %v417
        %v425 = vadd.s32 %v322, 4294967176
        %v426 = vlaneseq
        %v427 = vshrl.u32 %v426, 7
        %v428 = vsub.s32 %v425, %v427
        %v429 = vrot.slane %v288, %v428
        %vm430 = vcmask 1048512
        %v431 = vsel %vm430, %v429, %v424
        %433 = vmatprep.subr.mxu0 0.0
        %434 = vmatpush1.msra.mxu0 %v289
        %435 = vmatprep.subr.mxu0 0.0
        %436 = vmatpush1.msra.mxu0 %v290
        %437 = vmatprep.subr.mxu0 0.0
        %438 = vmatpush1.msra.mxu0 %v291
        %439 = vmatprep.subr.mxu0 0.0
        %440 = vmatpush1.msra.mxu0 %v292
        %441 = vmatprep.subr.mxu0 0.0
        %442 = vmatpush1.msra.mxu0 %v293
        %443 = vmatprep.subr.mxu0 0.0
        %444 = vmatpush1.msra.mxu0 %v294
        %445 = vmatprep.subr.mxu0 0.0
        %446 = vmatpush1.msra.mxu0 %v295
        %447 = vmatprep.subr.mxu0 0.0
        %448 = vmatpush1.msra.mxu0 %v296
        %449 = vmatprep.subr.mxu0 0.0
        %450 = vmatpush1.msra.mxu0 %v297
        %451 = vmatprep.subr.mxu0 0.0
        %452 = vmatpush1.msra.mxu0 %v298
        %453 = vmatprep.subr.mxu0 0.0
        %454 = vmatpush1.msra.mxu0 %v299
        %455 = vmatprep.subr.mxu0 0.0
        %456 = vmatpush1.msra.mxu0 %v300
        %457 = vmatprep.subr.mxu0 0.0
        %458 = vmatpush1.msra.mxu0 %v301
        %459 = vmatprep.subr.mxu0 0.0
        %460 = vmatpush1.msra.mxu0 %v302
        %461 = vmatprep.subr.mxu0 0.0
        %462 = vmatpush1.msra.mxu0 %v303
        %463 = vmatprep.subr.mxu0 0.0
        %464 = vmatpush1.msra.mxu0 %v304
        %465 = vmatprep.subr.mxu0 0.0
        %466 = vmatpush1.msra.mxu0 0.0
        %467 = vmatprep.subr.mxu0 0.0
        %468 = vmatpush1.msra.mxu0 0.0
        %469 = vmatprep.subr.mxu0 0.0
        %470 = vmatpush1.msra.mxu0 0.0
        %471 = vmatprep.subr.mxu0 0.0
        %472 = vmatpush1.msra.mxu0 0.0
        %473 = vmatprep.subr.mxu0 0.0
        %474 = vmatpush1.msra.mxu0 0.0
        %475 = vmatprep.subr.mxu0 0.0
        %476 = vmatpush1.msra.mxu0 0.0
        %477 = vmatprep.subr.mxu0 0.0
        %478 = vmatpush1.msra.mxu0 0.0
        %479 = vmatprep.subr.mxu0 0.0
        %480 = vmatpush1.msra.mxu0 0.0
        %481 = vmatprep.subr.mxu0 0.0
        %482 = vmatpush1.msra.mxu0 0.0
        %483 = vmatprep.subr.mxu0 0.0
        %484 = vmatpush1.msra.mxu0 0.0
        %485 = vmatprep.subr.mxu0 0.0
        %486 = vmatpush1.msra.mxu0 0.0
        %487 = vmatprep.subr.mxu0 0.0
        %488 = vmatpush1.msra.mxu0 0.0
        %489 = vmatprep.subr.mxu0 0.0
        %490 = vmatpush1.msra.mxu0 0.0
        %491 = vmatprep.subr.mxu0 0.0
        %492 = vmatpush1.msra.mxu0 0.0
        %493 = vmatprep.subr.mxu0 0.0
        %494 = vmatpush1.msra.mxu0 0.0
        %495 = vmatprep.subr.mxu0 0.0
        %496 = vmatpush1.msra.mxu0 0.0
        %497 = vmatprep.mubr.f32.mxu0 0.0
        %498 = vmatmul.mubr.f32.gmra.mrb[0].mxu0 %v431
        %v499 = vpop.f32.mrb[0].mxu0
        %v500 = vadd.f32 0.0, %v499
        %v501 = vpop.f32.mrb[0].mxu0
        %502 = vdwg.mxu0
        %v503 = vmax.f32 %v500, 0.0
        %v504 = vld [vmem:[%s2] sm:$0xff]
        %vm505 = vcmask 64512
        %v507 = vsel %vm505, %v503, 0
        %509 = vmatprep.subr.mxu0 0.0
        %510 = vmatpush1.msra.mxu0 %v504
        %511 = vmatprep.subr.mxu0 0.0
        %512 = vmatpush1.msra.mxu0 0.0
        %513 = vmatprep.subr.mxu0 0.0
        %514 = vmatpush1.msra.mxu0 0.0
        %515 = vmatprep.subr.mxu0 0.0
        %516 = vmatpush1.msra.mxu0 0.0
        %517 = vmatprep.subr.mxu0 0.0
        %518 = vmatpush1.msra.mxu0 0.0
        %519 = vmatprep.subr.mxu0 0.0
        %520 = vmatpush1.msra.mxu0 0.0
        %521 = vmatprep.subr.mxu0 0.0
        %522 = vmatpush1.msra.mxu0 0.0
        %523 = vmatprep.subr.mxu0 0.0
        %524 = vmatpush1.msra.mxu0 0.0
        %525 = vmatprep.subr.mxu0 0.0
        %526 = vmatpush1.msra.mxu0 0.0
        %527 = vmatprep.subr.mxu0 0.0
        %528 = vmatpush1.msra.mxu0 0.0
        %529 = vmatprep.subr.mxu0 0.0
        %530 = vmatpush1.msra.mxu0 0.0
        %531 = vmatprep.subr.mxu0 0.0
        %532 = vmatpush1.msra.mxu0 0.0
        %533 = vmatprep.subr.mxu0 0.0
        %534 = vmatpush1.msra.mxu0 0.0
        %535 = vmatprep.subr.mxu0 0.0
        %536 = vmatpush1.msra.mxu0 0.0
        %537 = vmatprep.subr.mxu0 0.0
        %538 = vmatpush1.msra.mxu0 0.0
        %539 = vmatprep.subr.mxu0 0.0
        %540 = vmatpush1.msra.mxu0 0.0
        %541 = vmatprep.subr.mxu0 0.0
        %542 = vmatpush1.msra.mxu0 0.0
        %543 = vmatprep.subr.mxu0 0.0
        %544 = vmatpush1.msra.mxu0 0.0
        %545 = vmatprep.subr.mxu0 0.0
        %546 = vmatpush1.msra.mxu0 0.0
        %547 = vmatprep.subr.mxu0 0.0
        %548 = vmatpush1.msra.mxu0 0.0
        %549 = vmatprep.subr.mxu0 0.0
        %550 = vmatpush1.msra.mxu0 0.0
        %551 = vmatprep.subr.mxu0 0.0
        %552 = vmatpush1.msra.mxu0 0.0
        %553 = vmatprep.subr.mxu0 0.0
        %554 = vmatpush1.msra.mxu0 0.0
        %555 = vmatprep.subr.mxu0 0.0
        %556 = vmatpush1.msra.mxu0 0.0
        %557 = vmatprep.subr.mxu0 0.0
        %558 = vmatpush1.msra.mxu0 0.0
        %559 = vmatprep.subr.mxu0 0.0
        %560 = vmatpush1.msra.mxu0 0.0
        %561 = vmatprep.subr.mxu0 0.0
        %562 = vmatpush1.msra.mxu0 0.0
        %563 = vmatprep.subr.mxu0 0.0
        %564 = vmatpush1.msra.mxu0 0.0
        %565 = vmatprep.subr.mxu0 0.0
        %566 = vmatpush1.msra.mxu0 0.0
        %567 = vmatprep.subr.mxu0 0.0
        %568 = vmatpush1.msra.mxu0 0.0
        %569 = vmatprep.subr.mxu0 0.0
        %570 = vmatpush1.msra.mxu0 0.0
        %571 = vmatprep.subr.mxu0 0.0
        %572 = vmatpush1.msra.mxu0 0.0
        %573 = vmatprep.mubr.f32.mxu0 0.0
        %574 = vmatmul.mubr.f32.gmra.mrb[0].mxu0 %v507
        %v575 = vpop.f32.mrb[0].mxu0
        %v576 = vadd.f32 0.0, %v575
        %v577 = vpop.f32.mrb[0].mxu0
        %578 = vdwg.mxu0
        %v579 = vsub.f32 0.0, %v576
        %v580 = vmul.f32 %v579, 1.442695
        %v581 = vpow.pop %v580
        %v582 = vadd.f32 %v581, 1.0
        %v583 = vrcp.pop %v582
        %v584 = vmul.f32 1.0, %v583
        %v585 = vlaneseq
        %v586 = vshrl.u32 %v585, 7
        %v587 = vsub.s32 0, %v586
        %v588 = vrot.slane %v584, %v587
        %590 = vbcast.lane.b32.xlu0 %v588, 256
        %v591 = vpop.permute.xlu0 %590
        %s593 = sor.u32 256, 8
        %594 = vbcast.lane.b32.xlu0 %v588, %s593
        %v595 = vpop.permute.xlu0 %594
        %s597 = sor.u32 256, 16
        %598 = vbcast.lane.b32.xlu0 %v588, %s597
        %v599 = vpop.permute.xlu0 %598
        %s601 = sor.u32 256, 24
        %602 = vbcast.lane.b32.xlu0 %v588, %s601
        %v603 = vpop.permute.xlu0 %602
        %s605 = sor.u32 256, 32
        %606 = vbcast.lane.b32.xlu0 %v588, %s605
        %v607 = vpop.permute.xlu0 %606
        %s609 = sor.u32 256, 40
        %610 = vbcast.lane.b32.xlu0 %v588, %s609
        %v611 = vpop.permute.xlu0 %610
        %s613 = sor.u32 256, 48
        %614 = vbcast.lane.b32.xlu0 %v588, %s613
        %v615 = vpop.permute.xlu0 %614
        %s617 = sor.u32 256, 56
        %618 = vbcast.lane.b32.xlu0 %v588, %s617
        %v619 = vpop.permute.xlu0 %618
        %s621 = sor.u32 256, 64
        %622 = vbcast.lane.b32.xlu0 %v588, %s621
        %v623 = vpop.permute.xlu0 %622
        %s625 = sor.u32 256, 72
        %626 = vbcast.lane.b32.xlu0 %v588, %s625
        %v627 = vpop.permute.xlu0 %626
        %s629 = sor.u32 256, 80
        %630 = vbcast.lane.b32.xlu0 %v588, %s629
        %v631 = vpop.permute.xlu0 %630
        %s633 = sor.u32 256, 88
        %634 = vbcast.lane.b32.xlu0 %v588, %s633
        %v635 = vpop.permute.xlu0 %634
        %s637 = sor.u32 256, 96
        %638 = vbcast.lane.b32.xlu0 %v588, %s637
        %v639 = vpop.permute.xlu0 %638
        %s641 = sor.u32 256, 104
        %642 = vbcast.lane.b32.xlu0 %v588, %s641
        %v643 = vpop.permute.xlu0 %642
        %s645 = sor.u32 256, 112
        %646 = vbcast.lane.b32.xlu0 %v588, %s645
        %v647 = vpop.permute.xlu0 %646
        %s649 = sor.u32 256, 120
        %650 = vbcast.lane.b32.xlu0 %v588, %s649
        %v651 = vpop.permute.xlu0 %650
        %v652 = vmul.f32 %v208, %v591
        %v653 = vmul.f32 %v209, %v595
        %v654 = vmul.f32 %v210, %v599
        %v655 = vmul.f32 %v211, %v603
        %v656 = vmul.f32 %v212, %v607
        %v657 = vmul.f32 %v213, %v611
        %v658 = vmul.f32 %v214, %v615
        %v659 = vmul.f32 %v215, %v619
        %v660 = vmul.f32 %v216, %v623
        %v661 = vmul.f32 %v217, %v627
        %v662 = vmul.f32 %v218, %v631
        %v663 = vmul.f32 %v219, %v635
        %v664 = vmul.f32 %v220, %v639
        %v665 = vmul.f32 %v221, %v643
        %v666 = vmul.f32 %v222, %v647
        %v667 = vmul.f32 %v223, %v651
        %668 = vst.msk [vmem:[%s207] sm:$0xff] %vm224, %v652
        %669 = vst.msk [vmem:[%s207 + $0x8] sm:$0xff] %vm224, %v653
        %670 = vst.msk [vmem:[%s207 + $0x10] sm:$0xff] %vm224, %v654
        %671 = vst.msk [vmem:[%s207 + $0x18] sm:$0xff] %vm224, %v655
        %672 = vst.msk [vmem:[%s207 + $0x20] sm:$0xff] %vm224, %v656
        %673 = vst.msk [vmem:[%s207 + $0x28] sm:$0xff] %vm224, %v657
        %674 = vst.msk [vmem:[%s207 + $0x30] sm:$0xff] %vm224, %v658
        %675 = vst.msk [vmem:[%s207 + $0x38] sm:$0xff] %vm224, %v659
        %676 = vst.msk [vmem:[%s207 + $0x40] sm:$0xff] %vm224, %v660
        %677 = vst.msk [vmem:[%s207 + $0x48] sm:$0xff] %vm224, %v661
        %678 = vst.msk [vmem:[%s207 + $0x50] sm:$0xff] %vm224, %v662
        %679 = vst.msk [vmem:[%s207 + $0x58] sm:$0xff] %vm224, %v663
        %680 = vst.msk [vmem:[%s207 + $0x60] sm:$0xff] %vm224, %v664
        %681 = vst.msk [vmem:[%s207 + $0x68] sm:$0xff] %vm224, %v665
        %682 = vst.msk [vmem:[%s207 + $0x70] sm:$0xff] %vm224, %v666
        %683 = vst.msk [vmem:[%s207 + $0x78] sm:$0xff] %vm224, %v667
        %v684 = vsub.f32 1.0, %v584
        %v686 = vlaneseq
        %v687 = vshrl.u32 %v686, 7
        %v688 = vsub.s32 0, %v687
        %v689 = vrot.slane %v684, %v688
        %691 = vbcast.lane.b32.xlu0 %v689, 256
        %v692 = vpop.permute.xlu0 %691
        %s694 = sor.u32 256, 8
        %695 = vbcast.lane.b32.xlu0 %v689, %s694
        %v696 = vpop.permute.xlu0 %695
        %s698 = sor.u32 256, 16
        %699 = vbcast.lane.b32.xlu0 %v689, %s698
        %v700 = vpop.permute.xlu0 %699
        %s702 = sor.u32 256, 24
        %703 = vbcast.lane.b32.xlu0 %v689, %s702
        %v704 = vpop.permute.xlu0 %703
        %s706 = sor.u32 256, 32
        %707 = vbcast.lane.b32.xlu0 %v689, %s706
        %v708 = vpop.permute.xlu0 %707
        %s710 = sor.u32 256, 40
        %711 = vbcast.lane.b32.xlu0 %v689, %s710
        %v712 = vpop.permute.xlu0 %711
        %s714 = sor.u32 256, 48
        %715 = vbcast.lane.b32.xlu0 %v689, %s714
        %v716 = vpop.permute.xlu0 %715
        %s718 = sor.u32 256, 56
        %719 = vbcast.lane.b32.xlu0 %v689, %s718
        %v720 = vpop.permute.xlu0 %719
        %s722 = sor.u32 256, 64
        %723 = vbcast.lane.b32.xlu0 %v689, %s722
        %v724 = vpop.permute.xlu0 %723
        %s726 = sor.u32 256, 72
        %727 = vbcast.lane.b32.xlu0 %v689, %s726
        %v728 = vpop.permute.xlu0 %727
        %s730 = sor.u32 256, 80
        %731 = vbcast.lane.b32.xlu0 %v689, %s730
        %v732 = vpop.permute.xlu0 %731
        %s734 = sor.u32 256, 88
        %735 = vbcast.lane.b32.xlu0 %v689, %s734
        %v736 = vpop.permute.xlu0 %735
        %s738 = sor.u32 256, 96
        %739 = vbcast.lane.b32.xlu0 %v689, %s738
        %v740 = vpop.permute.xlu0 %739
        %s742 = sor.u32 256, 104
        %743 = vbcast.lane.b32.xlu0 %v689, %s742
        %v744 = vpop.permute.xlu0 %743
        %s746 = sor.u32 256, 112
        %747 = vbcast.lane.b32.xlu0 %v689, %s746
        %v748 = vpop.permute.xlu0 %747
        %s750 = sor.u32 256, 120
        %751 = vbcast.lane.b32.xlu0 %v689, %s750
        %v752 = vpop.permute.xlu0 %751
        %v769 = vmul.f32 %v273, %v692
        %v770 = vmul.f32 %v274, %v696
        %v771 = vmul.f32 %v275, %v700
        %v772 = vmul.f32 %v276, %v704
        %v773 = vmul.f32 %v277, %v708
        %v774 = vmul.f32 %v278, %v712
        %v775 = vmul.f32 %v279, %v716
        %v776 = vmul.f32 %v280, %v720
        %v777 = vmul.f32 %v281, %v724
        %v778 = vmul.f32 %v282, %v728
        %v779 = vmul.f32 %v283, %v732
        %v780 = vmul.f32 %v284, %v736
        %v781 = vmul.f32 %v285, %v740
        %v782 = vmul.f32 %v286, %v744
        %v783 = vmul.f32 %v287, %v748
        %v784 = vmul.f32 %v288, %v752
        %801 = vset.pattern.permute.xlu0 0
        %802 = vperm.xlu0 %801, %v769
        %v803 = vpop.permute.xlu0 %802
        %804 = vset.pattern.permute.xlu0 0
        %805 = vperm.xlu0 %804, %v770
        %v806 = vpop.permute.xlu0 %805
        %807 = vset.pattern.permute.xlu0 0
        %808 = vperm.xlu0 %807, %v771
        %v809 = vpop.permute.xlu0 %808
        %810 = vset.pattern.permute.xlu0 0
        %811 = vperm.xlu0 %810, %v772
        %v812 = vpop.permute.xlu0 %811
        %813 = vset.pattern.permute.xlu0 0
        %814 = vperm.xlu0 %813, %v773
        %v815 = vpop.permute.xlu0 %814
        %816 = vset.pattern.permute.xlu0 0
        %817 = vperm.xlu0 %816, %v774
        %v818 = vpop.permute.xlu0 %817
        %819 = vset.pattern.permute.xlu0 0
        %820 = vperm.xlu0 %819, %v775
        %v821 = vpop.permute.xlu0 %820
        %822 = vset.pattern.permute.xlu0 0
        %823 = vperm.xlu0 %822, %v776
        %v824 = vpop.permute.xlu0 %823
        %825 = vset.pattern.permute.xlu0 0
        %826 = vperm.xlu0 %825, %v777
        %v827 = vpop.permute.xlu0 %826
        %828 = vset.pattern.permute.xlu0 0
        %829 = vperm.xlu0 %828, %v778
        %v830 = vpop.permute.xlu0 %829
        %831 = vset.pattern.permute.xlu0 0
        %832 = vperm.xlu0 %831, %v779
        %v833 = vpop.permute.xlu0 %832
        %834 = vset.pattern.permute.xlu0 0
        %835 = vperm.xlu0 %834, %v780
        %v836 = vpop.permute.xlu0 %835
        %837 = vset.pattern.permute.xlu0 0
        %838 = vperm.xlu0 %837, %v781
        %v839 = vpop.permute.xlu0 %838
        %840 = vset.pattern.permute.xlu0 0
        %841 = vperm.xlu0 %840, %v782
        %v842 = vpop.permute.xlu0 %841
        %843 = vset.pattern.permute.xlu0 0
        %844 = vperm.xlu0 %843, %v783
        %v845 = vpop.permute.xlu0 %844
        %846 = vset.pattern.permute.xlu0 0
        %847 = vperm.xlu0 %846, %v784
        %v848 = vpop.permute.xlu0 %847
        %v849 = vlaneseq
        %v850 = vshrl.u32 %v849, 7
        %v851 = vsub.s32 %v322, %v850
        %v852 = vrot.slane %v803, %v851
        %v853 = vlaneseq
        %v854 = vshrl.u32 %v853, 7
        %v855 = vsub.s32 %v327, %v854
        %v856 = vrot.slane %v806, %v855
        %v857 = vsel %vm332, %v856, %v852
        %v858 = vlaneseq
        %v859 = vshrl.u32 %v858, 7
        %v860 = vsub.s32 %v334, %v859
        %v861 = vrot.slane %v809, %v860
        %v862 = vsel %vm339, %v861, %v857
        %v863 = vlaneseq
        %v864 = vshrl.u32 %v863, 7
        %v865 = vsub.s32 %v341, %v864
        %v866 = vrot.slane %v812, %v865
        %v867 = vsel %vm346, %v866, %v862
        %v868 = vlaneseq
        %v869 = vshrl.u32 %v868, 7
        %v870 = vsub.s32 %v348, %v869
        %v871 = vrot.slane %v815, %v870
        %v872 = vsel %vm353, %v871, %v867
        %v873 = vlaneseq
        %v874 = vshrl.u32 %v873, 7
        %v875 = vsub.s32 %v355, %v874
        %v876 = vrot.slane %v818, %v875
        %v877 = vsel %vm360, %v876, %v872
        %v878 = vlaneseq
        %v879 = vshrl.u32 %v878, 7
        %v880 = vsub.s32 %v362, %v879
        %v881 = vrot.slane %v821, %v880
        %v882 = vsel %vm367, %v881, %v877
        %v883 = vlaneseq
        %v884 = vshrl.u32 %v883, 7
        %v885 = vsub.s32 %v369, %v884
        %v886 = vrot.slane %v824, %v885
        %v887 = vsel %vm374, %v886, %v882
        %v888 = vlaneseq
        %v889 = vshrl.u32 %v888, 7
        %v890 = vsub.s32 %v376, %v889
        %v891 = vrot.slane %v827, %v890
        %v892 = vsel %vm381, %v891, %v887
        %v893 = vlaneseq
        %v894 = vshrl.u32 %v893, 7
        %v895 = vsub.s32 %v383, %v894
        %v896 = vrot.slane %v830, %v895
        %v897 = vsel %vm388, %v896, %v892
        %v898 = vlaneseq
        %v899 = vshrl.u32 %v898, 7
        %v900 = vsub.s32 %v390, %v899
        %v901 = vrot.slane %v833, %v900
        %v902 = vsel %vm395, %v901, %v897
        %v903 = vlaneseq
        %v904 = vshrl.u32 %v903, 7
        %v905 = vsub.s32 %v397, %v904
        %v906 = vrot.slane %v836, %v905
        %v907 = vsel %vm402, %v906, %v902
        %v908 = vlaneseq
        %v909 = vshrl.u32 %v908, 7
        %v910 = vsub.s32 %v404, %v909
        %v911 = vrot.slane %v839, %v910
        %v912 = vsel %vm409, %v911, %v907
        %v913 = vlaneseq
        %v914 = vshrl.u32 %v913, 7
        %v915 = vsub.s32 %v411, %v914
        %v916 = vrot.slane %v842, %v915
        %v917 = vsel %vm416, %v916, %v912
        %v918 = vlaneseq
        %v919 = vshrl.u32 %v918, 7
        %v920 = vsub.s32 %v418, %v919
        %v921 = vrot.slane %v845, %v920
        %v922 = vsel %vm423, %v921, %v917
        %v923 = vlaneseq
        %v924 = vshrl.u32 %v923, 7
        %v925 = vsub.s32 %v425, %v924
        %v926 = vrot.slane %v848, %v925
        %v927 = vsel %vm430, %v926, %v922
        %929 = vst [vmem:[%s197] sm:$0x1] %v927
        %p930 = scmp.lt.s32.totalorder %s19, 1
        %s931 = scalar_select %p930, %s19, 1
        %s932 = smul.addr %s931, 16
        %s933 = smul.addr %s932, 8
        %s934 = scalar_lea.vmem %s3, %s933
        %s935 = sand.u32 %s121, 1
        %s936 = scalar_lea.sflag [#allocation3], %s935
        %s937 = sand.u32 %s121, 1
        %s938 = scalar_lea.vmem [#allocation2], %s937
        // Predicated region
        $region33: #{se_layer.1} parent=31 // pred_check
          %p939 = pneg %p105
        $region34: #{se_layer.1} parent=31 // pred_check_branch
          %941 = sbr.rel (%p939) target = $region36
        $region35: #{se_layer.1} parent=31 // pred_region
          _
        $region36: #{se_layer.1} parent=31 // pred_fallthru
          _
        // Predicated region
        $region37: #{se_layer.1} parent=31 // pred_check
          %p942 = pneg %p131
        $region38: #{se_layer.1} parent=31 // pred_check_branch
          %944 = sbr.rel (%p942) target = $region40
        $region39: #{se_layer.1} parent=31 // pred_region
          %s946 = ssub.s32 16, 16
          %947 = vsyncadd %s936, %s946
          %s948 = smul.addr %s19, 16
          %s949 = scalar_lea.hbm %s4, %s948
          %s951 = sshll.u32 %s938, 4
          %s952 = int_to_ptr.vmem [resolvable:$true] %s951
          %954 = dma.vmem_to_hbm [thread:$0]  %s952, 16, %s949, %s936
        $region40: #{se_layer.1} parent=31 // pred_fallthru
          _
      $region32: #{se_layer.1} parent=5 // pred_fallthru
        _
      %p955 = scmp.le.s32.totalorder 2, %s14
      // Predicated region
      $region41: #{se_layer.1} parent=5 // pred_check
        %p956 = pneg %p955
      $region42: #{se_layer.1} parent=5 // pred_check_branch
        %958 = sbr.rel (%p956) target = $region44
      $region43: #{se_layer.1} parent=5 // pred_region
        %s959 = ssub.s32 %s14, 2
        // Predicated region
        $region45: #{se_layer.1} parent=43 // pred_check
          %p960 = pneg %p111
        $region46: #{se_layer.1} parent=43 // pred_check_branch
          %962 = sbr.rel (%p960) target = $region48
        $region47: #{se_layer.1} parent=43 // pred_region
          %p963 = scmp.lt.s32.totalorder %s20, 1
          %s964 = scalar_select %p963, %s20, 1
          %s965 = smul.addr %s964, 16
          %s966 = smul.addr %s965, 8
          %s967 = scalar_lea.vmem %s3, %s966
        $region48: #{se_layer.1} parent=43 // pred_fallthru
          _
        // Predicated region
        $region49: #{se_layer.1} parent=43 // pred_check
          %p968 = pneg %p137
        $region50: #{se_layer.1} parent=43 // pred_check_branch
          %970 = sbr.rel (%p968) target = $region52
        $region51: #{se_layer.1} parent=43 // pred_region
          %s971 = sand.u32 %s122, 1
          %s972 = scalar_lea.sflag [#allocation3], %s971
          %s973 = sand.u32 %s122, 1
          %s974 = scalar_lea.vmem [#allocation2], %s973
          %975 = dma.done %s972, 16
        $region52: #{se_layer.1} parent=43 // pred_fallthru
          _
      $region44: #{se_layer.1} parent=5 // pred_fallthru
        _
    $region6: #{se_layer.1} parent=1 // loop_footer
      %s18 = sadd.s32 1, %s14
    $region7: #{se_layer.1} parent=1 // loop_footer_branch
      %13 = sbr.rel target = $region3
    $region8: #{se_layer.1} parent=1 // loop_exit
      _
    %976 = vsyncpa [#allocation3], 1
    %s977 = scalar_lea.sflag [#allocation3], 1
    %978 = vsyncpa %s977, 1

</llo_original>
